<compile_context>
chip_gen: v7x
topology: tpu7x:2x2x1
jax: 0.10.0
libtpu: 0.0.40
codegen_flags: <defaults>
</compile_context>

<pallas_src>
import jax
import jax.numpy as jnp
from jax.experimental import pallas as pl
from jax.experimental.pallas import tpu as pltpu


# ----------------------------------------------------------------------------
# Kernel: identity copy of one block
# ----------------------------------------------------------------------------
def _copy_kernel(x_ref, o_ref):
    o_ref[...] = x_ref[...]


# ----------------------------------------------------------------------------
# Layout helpers (all static / trace-time Python)
# ----------------------------------------------------------------------------
def _lane_dense_2d(n):
    """Factor the flat element count n into (rows, cols) with cols a multiple of
    128 (lane-dense loads/stores) whenever possible.  Fallback is a single full
    row, which is always a legal full-dim block."""
    for cols in (4096, 2048, 1024, 512, 256, 128):
        if n % cols == 0:
            return n // cols, cols
    return 1, n


def _pick_row_tile(rows, cols, dtype_bytes, max_block_bytes=4 * 1024 * 1024):
    """Biggest row tile that (a) is a multiple of 8 sublanes, (b) divides rows,
    and (c) keeps the block under max_block_bytes.  If rows is not a multiple
    of 8 use the full row extent (full-dim blocks are always legal)."""
    if rows % 8 != 0:
        return rows
    tile_r = 8
    while (tile_r * 2 <= rows
           and rows % (tile_r * 2) == 0
           and tile_r * 2 * cols * dtype_bytes <= max_block_bytes):
        tile_r *= 2
    return tile_r


# ----------------------------------------------------------------------------
# Wrapper: DinoImageEmbedding.forward(x) == x.unsqueeze(0)
# ----------------------------------------------------------------------------
@jax.jit
def dino_image_embedding(x):
    out_shape = (1,) + tuple(x.shape)
    n = x.size
    dtype_bytes = jnp.dtype(x.dtype).itemsize

    rows, cols = _lane_dense_2d(n)
    tile_r = _pick_row_tile(rows, cols, dtype_bytes)
    grid = (rows // tile_r,)

    # Free layout plumbing: contiguous row-major reshape, no transpose, no copy.
    x2 = x.reshape(rows, cols)

    out2 = pl.pallas_call(
        _copy_kernel,
        out_shape=jax.ShapeDtypeStruct((rows, cols), x.dtype),
        grid_spec=pltpu.PrefetchScalarGridSpec(
            num_scalar_prefetch=0,
            grid=grid,
            in_specs=[pl.BlockSpec((tile_r, cols), lambda i: (i, 0))],
            out_specs=pl.BlockSpec((tile_r, cols), lambda i: (i, 0)),
        ),
        compiler_params=pltpu.CompilerParams(
            dimension_semantics=("parallel",),
        ),
        cost_estimate=pl.CostEstimate(
            flops=0,
            transcendentals=0,
            bytes_accessed=2 * n * dtype_bytes,
        ),
    )(x2)

    # unsqueeze(0): pure metadata reshape back to (1, *x.shape).
    return out2.reshape(out_shape)


# ----------------------------------------------------------------------------
if __name__ == "__main__":
    key = jax.random.PRNGKey(0)
    # DINO-style image feature map: [batch=2, channels=4, 16, 16]
    x = jax.random.normal(key, (2, 4, 16, 16), dtype=jnp.float32)

    out = dino_image_embedding(x)
    out = jax.block_until_ready(out)

    ref = x[None]  # torch: x.unsqueeze(0)
    assert out.shape == (1, 2, 4, 16, 16), out.shape
    assert bool(jnp.array_equal(out, ref)), (
        f"max abs err = {jnp.max(jnp.abs(out - ref))}"
    )
    print("KERNEL_OK")
</pallas_src>

<mosaic_0001>
module attributes {stable_mosaic.version = 11 : i64} {
  func.func @_copy_kernel(%arg0: i32, %arg1: memref<1x2048xf32, #tpu.memory_space<vmem>>, %arg2: memref<1x2048xf32, #tpu.memory_space<vmem>>) attributes {dimension_semantics = [#tpu.dimension_semantics<parallel>], iteration_bounds = array<i64: 1>, scalar_prefetch = 0 : i64, scratch_operands = 0 : i64, tpu.core_type = #tpu.core_type<tc>, window_params = [{transform_indices = @transform_0, window_bounds = array<i64: 1, 2048>}, {transform_indices = @transform_1, window_bounds = array<i64: 1, 2048>}]} {
    %c0 = arith.constant 0 : index
    %c0_0 = arith.constant 0 : index
    %0 = vector.load %arg1[%c0, %c0_0] : memref<1x2048xf32, #tpu.memory_space<vmem>>, vector<1x2048xf32>
    %c0_1 = arith.constant 0 : index
    %c0_2 = arith.constant 0 : index
    %1 = vector.load %arg2[%c0_1, %c0_2] : memref<1x2048xf32, #tpu.memory_space<vmem>>, vector<1x2048xf32>
    tpu.vector_store %arg2[%c0_1, %c0_2], %0 {strides = array<i32>} : memref<1x2048xf32, #tpu.memory_space<vmem>>, vector<1x2048xf32>,
    return
  }
  func.func @transform_0(%arg0: i32) -> (i32, i32) {
    %c0_i32 = arith.constant 0 : i32
    %c0_i32_0 = arith.constant 0 : i32
    return %arg0, %c0_i32 : i32, i32
  }
  func.func @transform_1(%arg0: i32) -> (i32, i32) {
    %c0_i32 = arith.constant 0 : i32
    %c0_i32_0 = arith.constant 0 : i32
    return %arg0, %c0_i32 : i32, i32
  }
}

</mosaic_0001>

<llo_original>
// kernel: dino_image_embedding.1
$region0: #{dino_image_embedding.1}
  #allocation0 [shape = 'u32[]', space=smem, size = 0x4, offset = 0x4, fixed_abs, tag = 'smem constant byte address 0x4 - core index']
  #allocation1 [shape = 'u32[144,128]{1,0:T(1,128)}', space=vmem, size = 0x12000, scoped, tag = 'internal scratch']
  %s0 = inlined_call_operand.vmem [shape: f32[1,2048], index: 0, kind: input, shape index: {}]
  %s1 = inlined_call_operand.vmem [shape: f32[1,2048], index: 1, kind: output, shape index: {}]
  %s2 = sld [smem:[#allocation0]]
  $region14: #{dino_image_embedding.1} parent=0
    _
  %s4 = ssub.s32 1, %s2
  %s5 = scalar_select 0, %s4, %s2
  // Predicated region
  $region2: #{dino_image_embedding.1} parent=0 // pred_check
    _
  $region3: #{dino_image_embedding.1} parent=0 // pred_check_branch
    %7 = sbr.rel (0) target = $region5
  $region4: #{dino_image_embedding.1} parent=0 // pred_region
    _
  $region5: #{dino_image_embedding.1} parent=0 // pred_fallthru
    _
  %v8 = vld [vmem:[%s0] sm:$0xff]
  %v9 = vld [vmem:[%s0 + $0x8] sm:$0xff]
  %10 = vst [vmem:[%s1] sm:$0xff] %v8
  %11 = vst [vmem:[%s1 + $0x8] sm:$0xff] %v9
  // Predicated region
  $region6: #{dino_image_embedding.1} parent=0 // pred_check
    _
  $region7: #{dino_image_embedding.1} parent=0 // pred_check_branch
    %13 = sbr.rel (0) target = $region9
  $region8: #{dino_image_embedding.1} parent=0 // pred_region
    _
  $region9: #{dino_image_embedding.1} parent=0 // pred_fallthru
    _
  // Predicated region
  $region10: #{dino_image_embedding.1} parent=0 // pred_check
    _
  $region11: #{dino_image_embedding.1} parent=0 // pred_check_branch
    %15 = sbr.rel (0) target = $region13
  $region12: #{dino_image_embedding.1} parent=0 // pred_region
    _
  $region13: #{dino_image_embedding.1} parent=0 // pred_fallthru
    _

</llo_original>
